<compile_context>
chip_gen: v5e
topology: v5e:2x2
jax: 0.10.0
libtpu: 0.0.40
codegen_flags: <defaults>
</compile_context>

<pallas_src>
import jax
import jax.numpy as jnp
from jax.experimental import pallas as pl
from jax.experimental.pallas import tpu as pltpu


def _round_up(x, m):
    return (x + m - 1) // m * m


def _gpt_head_kernel(x_ref, w_ref, out_ref):
    """One (tm, tn) logits tile per grid step.

    x_ref:   (tm, E_pad)  bf16  fused (tok + pos) activation rows (flat B*S)
    w_ref:   (E_pad, tn)  bf16  output-head weight, pre-transposed to (K, N)
    out_ref: (tm, tn)           logits tile (f32 by default)
    """
    # nn.Dropout (eval), DummyTransformerBlock x n_layers and DummyLayerNorm
    # are identity -> no-op.  Output head on the MXU, f32 accumulation.
    out_ref[...] = jnp.dot(
        x_ref[...], w_ref[...], preferred_element_type=jnp.float32
    ).astype(out_ref.dtype)


def dummy_gpt_forward(in_idx, tok_emb, pos_emb, w_out, *, tm=512, tn=2048,
                      param_dtype=jnp.bfloat16, out_dtype=jnp.float32):
    """DummyGPTModel forward.

    in_idx:  (B, S) int32
    tok_emb: (V, E) f32
    pos_emb: (Ctx, E) f32, Ctx >= S
    w_out:   (V, E) f32    (nn.Linear(emb, vocab, bias=False) weight layout)
    Returns logits (B, S, V) in `out_dtype` (default float32).

    Note: param_dtype=bf16 quantizes weights/activations relative to the f32
    PyTorch reference (~1e-2-scale deviations); pass param_dtype=jnp.float32
    for bit-faithful math at the cost of the slower f32 MXU path and 2x the
    weight HBM traffic.
    """
    B, S = in_idx.shape
    V, E = w_out.shape
    M = B * S

    # Lane/sublane + MXU friendly tiling (clamp to the problem, then re-round
    # so arbitrary user-supplied tm/tn still satisfy the (8, 128) rule).
    E_pad = _round_up(E, 128)
    tm = _round_up(min(tm, _round_up(M, 8)), 8)
    tn = _round_up(min(tn, _round_up(V, 128)), 128)
    M_pad = _round_up(M, tm)
    V_pad = _round_up(V, tn)
    grid_m = M_pad // tm
    grid_n = V_pad // tn

    # Glue: one fused gather + pos-add + bf16 cast + pad (single (M_pad, E_pad)
    # pre-kernel write instead of several f32 intermediates).
    x = (jnp.take(tok_emb, in_idx, axis=0) + pos_emb[:S][None, :, :])
    x = x.reshape(M, E).astype(param_dtype)
    x = jnp.pad(x, ((0, M_pad - M), (0, E_pad - E)))

    # One-time pre-transpose + cast of the output head so the kernel RHS is
    # (K, N) with a dense, 128-multiple lane (vocab) dimension.
    w_ev = jnp.pad(w_out, ((0, V_pad - V), (0, E_pad - E))).T.astype(param_dtype)

    # Exact VMEM budget: double-buffered x / w / out tiles, ~20% headroom,
    # capped at 48 MiB to stay safe on v7x's 64 MiB per-TC VMEM.
    p_bytes = jnp.dtype(param_dtype).itemsize
    o_bytes = jnp.dtype(out_dtype).itemsize
    est = 2 * (tm * E_pad * p_bytes + E_pad * tn * p_bytes + tm * tn * o_bytes)
    vmem_limit_bytes = int(min(max(1.2 * est, 16 * 2**20), 48 * 2**20))

    logits = pl.pallas_call(
        _gpt_head_kernel,
        out_shape=jax.ShapeDtypeStruct((M_pad, V_pad), out_dtype),
        grid_spec=pltpu.PrefetchScalarGridSpec(
            num_scalar_prefetch=0,
            # N (vocab tiles) outer, M (row tiles) inner: the big weight tile
            # is invariant along the inner M axis and stays VMEM-resident.
            grid=(grid_n, grid_m),
            in_specs=[
                pl.BlockSpec((tm, E_pad), lambda n, m: (m, 0)),   # activations
                pl.BlockSpec((E_pad, tn), lambda n, m: (0, n)),   # weight (K,N)
            ],
            out_specs=pl.BlockSpec((tm, tn), lambda n, m: (m, n)),
        ),
        compiler_params=pltpu.CompilerParams(
            dimension_semantics=("parallel", "arbitrary"),
            vmem_limit_bytes=vmem_limit_bytes,
        ),
    )(x, w_ev)

    return logits[:M, :V].reshape(B, S, V)


if __name__ == "__main__":
    # Small, deterministic config consistent with DummyGPTModel's forward
    # (deliberately non-multiples of 8/128 to exercise the padding path).
    cfg = {
        "vocab_size": 1000,
        "context_length": 80,
        "emb_dim": 96,
        "n_heads": 4,
        "n_layers": 3,
        "drop_rate": 0.1,
        "qkv_bias": False,
    }
    B, S = 3, 72

    key = jax.random.PRNGKey(0)
    k_tok, k_pos, k_w, k_idx = jax.random.split(key, 4)

    tok_emb = jax.random.normal(
        k_tok, (cfg["vocab_size"], cfg["emb_dim"]), dtype=jnp.float32
    )
    pos_emb = jax.random.normal(
        k_pos, (cfg["context_length"], cfg["emb_dim"]), dtype=jnp.float32
    )
    # nn.Linear(emb_dim, vocab_size, bias=False) weight has shape (vocab, emb).
    w_out = jax.random.normal(
        k_w, (cfg["vocab_size"], cfg["emb_dim"]), dtype=jnp.float32
    ) * (1.0 / jnp.sqrt(cfg["emb_dim"]))

    in_idx = jax.random.randint(
        k_idx, (B, S), 0, cfg["vocab_size"], dtype=jnp.int32
    )

    logits = dummy_gpt_forward(in_idx, tok_emb, pos_emb, w_out)
    jax.block_until_ready(logits)

    # Reference with the same bf16 quantization of operands, f32 accumulation.
    x_ref = jnp.take(tok_emb, in_idx, axis=0) + pos_emb[:S][None, :, :]
    x_bf = x_ref.astype(jnp.bfloat16).astype(jnp.float32)
    w_bf = w_out.astype(jnp.bfloat16).astype(jnp.float32)
    ref = jnp.einsum("bse,ve->bsv", x_bf, w_bf)

    assert logits.shape == (B, S, cfg["vocab_size"])
    max_err = float(jnp.max(jnp.abs(logits - ref)))
    assert jnp.allclose(logits, ref, atol=5e-3, rtol=5e-3), max_err

    print("KERNEL_OK")
</pallas_src>

<mosaic_0001>
module attributes {stable_mosaic.version = 11 : i64} {
  func.func @_gpt_head_kernel(%arg0: i32, %arg1: i32, %arg2: memref<216x128xbf16, #tpu.memory_space<vmem>>, %arg3: memref<128x1024xbf16, #tpu.memory_space<vmem>>, %arg4: memref<216x1024xf32, #tpu.memory_space<vmem>>) attributes {dimension_semantics = [#tpu.dimension_semantics<parallel>, #tpu.dimension_semantics<arbitrary>], iteration_bounds = array<i64: 1, 1>, scalar_prefetch = 0 : i64, scratch_operands = 0 : i64, tpu.core_type = #tpu.core_type<tc>, window_params = [{transform_indices = @transform_0, window_bounds = array<i64: 216, 128>}, {transform_indices = @transform_1, window_bounds = array<i64: 128, 1024>}, {transform_indices = @transform_2, window_bounds = array<i64: 216, 1024>}]} {
    %c0 = arith.constant 0 : index
    %c0_0 = arith.constant 0 : index
    %0 = vector.load %arg2[%c0, %c0_0] : memref<216x128xbf16, #tpu.memory_space<vmem>>, vector<216x128xbf16>
    %c0_1 = arith.constant 0 : index
    %c0_2 = arith.constant 0 : index
    %1 = vector.load %arg3[%c0_1, %c0_2] : memref<128x1024xbf16, #tpu.memory_space<vmem>>, vector<128x1024xbf16>
    %cst = arith.constant dense<0.000000e+00> : vector<216x1024xf32>
    %2 = tpu.matmul %0, %1, %cst {dimension_numbers = #tpu.dot_dimension_numbers<[1], [0], [0], [1], [0, 0, 1, 1], [], []>} : vector<216x128xbf16>, vector<128x1024xbf16>, vector<216x1024xf32> -> vector<216x1024xf32>
    %c0_3 = arith.constant 0 : index
    %c0_4 = arith.constant 0 : index
    %3 = vector.load %arg4[%c0_3, %c0_4] : memref<216x1024xf32, #tpu.memory_space<vmem>>, vector<216x1024xf32>
    tpu.vector_store %arg4[%c0_3, %c0_4], %2 {strides = array<i32>} : memref<216x1024xf32, #tpu.memory_space<vmem>>, vector<216x1024xf32>,
    return
  }
  func.func @transform_0(%arg0: i32, %arg1: i32) -> (i32, i32) {
    %c0_i32 = arith.constant 0 : i32
    %c0_i32_0 = arith.constant 0 : i32
    return %arg1, %c0_i32 : i32, i32
  }
  func.func @transform_1(%arg0: i32, %arg1: i32) -> (i32, i32) {
    %c0_i32 = arith.constant 0 : i32
    %c0_i32_0 = arith.constant 0 : i32
    return %c0_i32, %arg0 : i32, i32
  }
  func.func @transform_2(%arg0: i32, %arg1: i32) -> (i32, i32) {
    %c0_i32 = arith.constant 0 : i32
    return %arg1, %arg0 : i32, i32
  }
}

</mosaic_0001>

<llo_original>
// kernel: tpu_custom_call.1
$region0: #{tpu_custom_call.1}
  #allocation0 [shape = 'u32[]', space=smem, size = 0x4, offset = 0x4, fixed_abs, tag = 'smem constant byte address 0x4 - core index']
  #allocation1 [shape = 'u32[72,128]{1,0:T(1,128)}', space=vmem, size = 0x9000, scoped, tag = 'internal scratch']
  %s0 = inlined_call_operand.hbm [shape: bf16[216,128], index: 0, kind: input, shape index: {}]
  %s1 = inlined_call_operand.hbm [shape: bf16[128,1024], index: 1, kind: input, shape index: {}]
  %s2 = inlined_call_operand.hbm [shape: f32[216,1024], index: 2, kind: output, shape index: {}]
  %s3 = sld [smem:[#allocation0]]
  $region26: #{tpu_custom_call.1} parent=0
    _
  %s5 = ssub.s32 1, %s3
  %s6 = scalar_select 0, %s5, %s3
  $region1: #{tpu_custom_call.1} parent=0
    #allocation2 [shape = 'u8[55296]{0}', space=vmem, size = 0xd800, scoped, tag = 'input window, operand 0, single buffered']
    #allocation3 [shape = 's32[1]{0}', space=sflag, size = 0x4, scoped, tag = 'scoped memory for tpu_custom_call.1']
    #allocation4 [shape = 's32[1]{0}', space=sflag, size = 0x4, scoped, tag = 'scoped memory for tpu_custom_call.1']
    #allocation5 [shape = 'u8[262144]{0}', space=vmem, size = 0x40000, scoped, tag = 'input window, operand 1, single buffered']
    #allocation6 [shape = 's32[1]{0}', space=sflag, size = 0x4, scoped, tag = 'scoped memory for tpu_custom_call.1']
    #allocation7 [shape = 'u8[884736]{0}', space=vmem, size = 0xd8000, scoped, tag = 'output window, operand 0, single buffered']
    %7 = vsyncpa [#allocation3], 0
    %8 = vsyncpa [#allocation6], 0
    %9 = vsyncpa [#allocation4], 0
    // Predicated region
    $region2: #{tpu_custom_call.1} parent=1 // pred_check
      _
    $region3: #{tpu_custom_call.1} parent=1 // pred_check_branch
      %11 = sbr.rel (0) target = $region5
    $region4: #{tpu_custom_call.1} parent=1 // pred_region
      %13 = vsyncadd [#allocation3], 0
      %s14 = sshll.u32 %s0, 4
      %s15 = int_to_ptr.hbm [resolvable:$true] %s14
      %s16 = sshll.u32 [#allocation2], 4
      %s17 = int_to_ptr.vmem [resolvable:$true] %s16
      %22 = dma.hbm_to_vmem [thread:$0]  %s15, 1728, %s17, [#allocation3], 64, 64, 4
    $region5: #{tpu_custom_call.1} parent=1 // pred_fallthru
      _
    // Predicated region
    $region6: #{tpu_custom_call.1} parent=1 // pred_check
      _
    $region7: #{tpu_custom_call.1} parent=1 // pred_check_branch
      %24 = sbr.rel (0) target = $region9
    $region8: #{tpu_custom_call.1} parent=1 // pred_region
      %26 = vsyncadd [#allocation6], 0
      %s27 = sshll.u32 %s1, 4
      %s28 = int_to_ptr.hbm [resolvable:$true] %s27
      %s29 = sshll.u32 [#allocation5], 4
      %s30 = int_to_ptr.vmem [resolvable:$true] %s29
      %35 = dma.hbm_to_vmem [thread:$0]  %s28, 8192, %s30, [#allocation6], 512, 512, 32
    $region9: #{tpu_custom_call.1} parent=1 // pred_fallthru
      _
    // Predicated region
    $region10: #{tpu_custom_call.1} parent=1 // pred_check
      _
    $region11: #{tpu_custom_call.1} parent=1 // pred_check_branch
      %37 = sbr.rel (0) target = $region13
    $region12: #{tpu_custom_call.1} parent=1 // pred_region
      %39 = dma.done [#allocation3], 1728
    $region13: #{tpu_custom_call.1} parent=1 // pred_fallthru
      _
    // Predicated region
    $region14: #{tpu_custom_call.1} parent=1 // pred_check
      _
    $region15: #{tpu_custom_call.1} parent=1 // pred_check_branch
      %41 = sbr.rel (0) target = $region17
    $region16: #{tpu_custom_call.1} parent=1 // pred_region
      %43 = dma.done [#allocation6], 8192
    $region17: #{tpu_custom_call.1} parent=1 // pred_fallthru
      _
    %v44 = vld [vmem:[#allocation2] sm:$0xf]
    %v45 = vld [vmem:[#allocation2 + $0x4] sm:$0xf]
    %v46 = vld [vmem:[#allocation2 + $0x8] sm:$0xf]
    %v47 = vld [vmem:[#allocation2 + $0xc] sm:$0xf]
    %v48 = vld [vmem:[#allocation2 + $0x10] sm:$0xf]
    %v49 = vld [vmem:[#allocation2 + $0x14] sm:$0xf]
    %v50 = vld [vmem:[#allocation2 + $0x18] sm:$0xf]
    %v51 = vld [vmem:[#allocation2 + $0x1c] sm:$0xf]
    %v52 = vld [vmem:[#allocation2 + $0x20] sm:$0xf]
    %v53 = vld [vmem:[#allocation2 + $0x24] sm:$0xf]
    %v54 = vld [vmem:[#allocation2 + $0x28] sm:$0xf]
    %v55 = vld [vmem:[#allocation2 + $0x2c] sm:$0xf]
    %v56 = vld [vmem:[#allocation2 + $0x30] sm:$0xf]
    %v57 = vld [vmem:[#allocation2 + $0x34] sm:$0xf]
    %v58 = vld [vmem:[#allocation2 + $0x38] sm:$0xf]
    %v59 = vld [vmem:[#allocation2 + $0x3c] sm:$0xf]
    %v60 = vld [vmem:[#allocation2 + $0x40] sm:$0xf]
    %v61 = vld [vmem:[#allocation2 + $0x44] sm:$0xf]
    %v62 = vld [vmem:[#allocation2 + $0x48] sm:$0xf]
    %v63 = vld [vmem:[#allocation2 + $0x4c] sm:$0xf]
    %v64 = vld [vmem:[#allocation2 + $0x50] sm:$0xf]
    %v65 = vld [vmem:[#allocation2 + $0x54] sm:$0xf]
    %v66 = vld [vmem:[#allocation2 + $0x58] sm:$0xf]
    %v67 = vld [vmem:[#allocation2 + $0x5c] sm:$0xf]
    %v68 = vld [vmem:[#allocation2 + $0x60] sm:$0xf]
    %v69 = vld [vmem:[#allocation2 + $0x64] sm:$0xf]
    %v70 = vld [vmem:[#allocation2 + $0x68] sm:$0xf]
    %v71 = vld [vmem:[#allocation5] sm:$0xff]
    %v72 = vld [vmem:[#allocation5 + $0x8] sm:$0xff]
    %v73 = vld [vmem:[#allocation5 + $0x10] sm:$0xff]
    %v74 = vld [vmem:[#allocation5 + $0x18] sm:$0xff]
    %v75 = vld [vmem:[#allocation5 + $0x20] sm:$0xff]
    %v76 = vld [vmem:[#allocation5 + $0x28] sm:$0xff]
    %v77 = vld [vmem:[#allocation5 + $0x30] sm:$0xff]
    %v78 = vld [vmem:[#allocation5 + $0x38] sm:$0xff]
    %v79 = vld [vmem:[#allocation5 + $0x40] sm:$0xff]
    %v80 = vld [vmem:[#allocation5 + $0x48] sm:$0xff]
    %v81 = vld [vmem:[#allocation5 + $0x50] sm:$0xff]
    %v82 = vld [vmem:[#allocation5 + $0x58] sm:$0xff]
    %v83 = vld [vmem:[#allocation5 + $0x60] sm:$0xff]
    %v84 = vld [vmem:[#allocation5 + $0x68] sm:$0xff]
    %v85 = vld [vmem:[#allocation5 + $0x70] sm:$0xff]
    %v86 = vld [vmem:[#allocation5 + $0x78] sm:$0xff]
    %v87 = vld [vmem:[#allocation5 + $0x80] sm:$0xff]
    %v88 = vld [vmem:[#allocation5 + $0x88] sm:$0xff]
    %v89 = vld [vmem:[#allocation5 + $0x90] sm:$0xff]
    %v90 = vld [vmem:[#allocation5 + $0x98] sm:$0xff]
    %v91 = vld [vmem:[#allocation5 + $0xa0] sm:$0xff]
    %v92 = vld [vmem:[#allocation5 + $0xa8] sm:$0xff]
    %v93 = vld [vmem:[#allocation5 + $0xb0] sm:$0xff]
    %v94 = vld [vmem:[#allocation5 + $0xb8] sm:$0xff]
    %v95 = vld [vmem:[#allocation5 + $0xc0] sm:$0xff]
    %v96 = vld [vmem:[#allocation5 + $0xc8] sm:$0xff]
    %v97 = vld [vmem:[#allocation5 + $0xd0] sm:$0xff]
    %v98 = vld [vmem:[#allocation5 + $0xd8] sm:$0xff]
    %v99 = vld [vmem:[#allocation5 + $0xe0] sm:$0xff]
    %v100 = vld [vmem:[#allocation5 + $0xe8] sm:$0xff]
    %v101 = vld [vmem:[#allocation5 + $0xf0] sm:$0xff]
    %v102 = vld [vmem:[#allocation5 + $0xf8] sm:$0xff]
    %v103 = vld [vmem:[#allocation5 + $0x100] sm:$0xff]
    %v104 = vld [vmem:[#allocation5 + $0x108] sm:$0xff]
    %v105 = vld [vmem:[#allocation5 + $0x110] sm:$0xff]
    %v106 = vld [vmem:[#allocation5 + $0x118] sm:$0xff]
    %v107 = vld [vmem:[#allocation5 + $0x120] sm:$0xff]
    %v108 = vld [vmem:[#allocation5 + $0x128] sm:$0xff]
    %v109 = vld [vmem:[#allocation5 + $0x130] sm:$0xff]
    %v110 = vld [vmem:[#allocation5 + $0x138] sm:$0xff]
    %v111 = vld [vmem:[#allocation5 + $0x140] sm:$0xff]
    %v112 = vld [vmem:[#allocation5 + $0x148] sm:$0xff]
    %v113 = vld [vmem:[#allocation5 + $0x150] sm:$0xff]
    %v114 = vld [vmem:[#allocation5 + $0x158] sm:$0xff]
    %v115 = vld [vmem:[#allocation5 + $0x160] sm:$0xff]
    %v116 = vld [vmem:[#allocation5 + $0x168] sm:$0xff]
    %v117 = vld [vmem:[#allocation5 + $0x170] sm:$0xff]
    %v118 = vld [vmem:[#allocation5 + $0x178] sm:$0xff]
    %v119 = vld [vmem:[#allocation5 + $0x180] sm:$0xff]
    %v120 = vld [vmem:[#allocation5 + $0x188] sm:$0xff]
    %v121 = vld [vmem:[#allocation5 + $0x190] sm:$0xff]
    %v122 = vld [vmem:[#allocation5 + $0x198] sm:$0xff]
    %v123 = vld [vmem:[#allocation5 + $0x1a0] sm:$0xff]
    %v124 = vld [vmem:[#allocation5 + $0x1a8] sm:$0xff]
    %v125 = vld [vmem:[#allocation5 + $0x1b0] sm:$0xff]
    %v126 = vld [vmem:[#allocation5 + $0x1b8] sm:$0xff]
    %v127 = vld [vmem:[#allocation5 + $0x1c0] sm:$0xff]
    %v128 = vld [vmem:[#allocation5 + $0x1c8] sm:$0xff]
    %v129 = vld [vmem:[#allocation5 + $0x1d0] sm:$0xff]
    %v130 = vld [vmem:[#allocation5 + $0x1d8] sm:$0xff]
    %v131 = vld [vmem:[#allocation5 + $0x1e0] sm:$0xff]
    %v132 = vld [vmem:[#allocation5 + $0x1e8] sm:$0xff]
    %v133 = vld [vmem:[#allocation5 + $0x1f0] sm:$0xff]
    %v134 = vld [vmem:[#allocation5 + $0x1f8] sm:$0xff]
    %v162 = vunpack.c.l.b16 %v44
    %v163 = vunpack.c.l.b16 %v45
    %v164 = vunpack.c.l.b16 %v46
    %v165 = vunpack.c.l.b16 %v47
    %v166 = vunpack.c.l.b16 %v48
    %v167 = vunpack.c.l.b16 %v49
    %v168 = vunpack.c.l.b16 %v50
    %v169 = vunpack.c.l.b16 %v51
    %v170 = vunpack.c.l.b16 %v52
    %v171 = vunpack.c.l.b16 %v53
    %v172 = vunpack.c.l.b16 %v54
    %v173 = vunpack.c.l.b16 %v55
    %v174 = vunpack.c.l.b16 %v56
    %v175 = vunpack.c.l.b16 %v57
    %v176 = vunpack.c.l.b16 %v58
    %v177 = vunpack.c.l.b16 %v59
    %v178 = vunpack.c.l.b16 %v60
    %v179 = vunpack.c.l.b16 %v61
    %v180 = vunpack.c.l.b16 %v62
    %v181 = vunpack.c.l.b16 %v63
    %v182 = vunpack.c.l.b16 %v64
    %v183 = vunpack.c.l.b16 %v65
    %v184 = vunpack.c.l.b16 %v66
    %v185 = vunpack.c.l.b16 %v67
    %v186 = vunpack.c.l.b16 %v68
    %v187 = vunpack.c.l.b16 %v69
    %v188 = vunpack.c.l.b16 %v70
    %v189 = vpack.c.b16 %v163, %v162
    %v190 = vpack.c.b16 %v165, %v164
    %v191 = vpack.c.b16 %v167, %v166
    %v192 = vpack.c.b16 %v169, %v168
    %v193 = vpack.c.b16 %v171, %v170
    %v194 = vpack.c.b16 %v173, %v172
    %v195 = vpack.c.b16 %v175, %v174
    %v196 = vpack.c.b16 %v177, %v176
    %v197 = vpack.c.b16 %v179, %v178
    %v198 = vpack.c.b16 %v181, %v180
    %v199 = vpack.c.b16 %v183, %v182
    %v200 = vpack.c.b16 %v185, %v184
    %v201 = vpack.c.b16 %v187, %v186
    %v202 = vpack.c.b16 %v188, %v188
    %v281 = vunpack.c.l.b16 %v71
    %v282 = vunpack.c.h.b16 %v71
    %v283 = vunpack.c.l.b16 %v72
    %v284 = vunpack.c.h.b16 %v72
    %v285 = vunpack.c.l.b16 %v73
    %v286 = vunpack.c.h.b16 %v73
    %v287 = vunpack.c.l.b16 %v74
    %v288 = vunpack.c.h.b16 %v74
    %v289 = vunpack.c.l.b16 %v75
    %v290 = vunpack.c.h.b16 %v75
    %v291 = vunpack.c.l.b16 %v76
    %v292 = vunpack.c.h.b16 %v76
    %v293 = vunpack.c.l.b16 %v77
    %v294 = vunpack.c.h.b16 %v77
    %v295 = vunpack.c.l.b16 %v78
    %v296 = vunpack.c.h.b16 %v78
    %v297 = vunpack.c.l.b16 %v79
    %v298 = vunpack.c.h.b16 %v79
    %v299 = vunpack.c.l.b16 %v80
    %v300 = vunpack.c.h.b16 %v80
    %v301 = vunpack.c.l.b16 %v81
    %v302 = vunpack.c.h.b16 %v81
    %v303 = vunpack.c.l.b16 %v82
    %v304 = vunpack.c.h.b16 %v82
    %v305 = vunpack.c.l.b16 %v83
    %v306 = vunpack.c.h.b16 %v83
    %v307 = vunpack.c.l.b16 %v84
    %v308 = vunpack.c.h.b16 %v84
    %v309 = vunpack.c.l.b16 %v85
    %v310 = vunpack.c.h.b16 %v85
    %v311 = vunpack.c.l.b16 %v86
    %v312 = vunpack.c.h.b16 %v86
    %v313 = vunpack.c.l.b16 %v87
    %v314 = vunpack.c.h.b16 %v87
    %v315 = vunpack.c.l.b16 %v88
    %v316 = vunpack.c.h.b16 %v88
    %v317 = vunpack.c.l.b16 %v89
    %v318 = vunpack.c.h.b16 %v89
    %v319 = vunpack.c.l.b16 %v90
    %v320 = vunpack.c.h.b16 %v90
    %v321 = vunpack.c.l.b16 %v91
    %v322 = vunpack.c.h.b16 %v91
    %v323 = vunpack.c.l.b16 %v92
    %v324 = vunpack.c.h.b16 %v92
    %v325 = vunpack.c.l.b16 %v93
    %v326 = vunpack.c.h.b16 %v93
    %v327 = vunpack.c.l.b16 %v94
    %v328 = vunpack.c.h.b16 %v94
    %v329 = vunpack.c.l.b16 %v95
    %v330 = vunpack.c.h.b16 %v95
    %v331 = vunpack.c.l.b16 %v96
    %v332 = vunpack.c.h.b16 %v96
    %v333 = vunpack.c.l.b16 %v97
    %v334 = vunpack.c.h.b16 %v97
    %v335 = vunpack.c.l.b16 %v98
    %v336 = vunpack.c.h.b16 %v98
    %v337 = vunpack.c.l.b16 %v99
    %v338 = vunpack.c.h.b16 %v99
    %v339 = vunpack.c.l.b16 %v100
    %v340 = vunpack.c.h.b16 %v100
    %v341 = vunpack.c.l.b16 %v101
    %v342 = vunpack.c.h.b16 %v101
    %v343 = vunpack.c.l.b16 %v102
    %v344 = vunpack.c.h.b16 %v102
    %v345 = vunpack.c.l.b16 %v103
    %v346 = vunpack.c.h.b16 %v103
    %v347 = vunpack.c.l.b16 %v104
    %v348 = vunpack.c.h.b16 %v104
    %v349 = vunpack.c.l.b16 %v105
    %v350 = vunpack.c.h.b16 %v105
    %v351 = vunpack.c.l.b16 %v106
    %v352 = vunpack.c.h.b16 %v106
    %v353 = vunpack.c.l.b16 %v107
    %v354 = vunpack.c.h.b16 %v107
    %v355 = vunpack.c.l.b16 %v108
    %v356 = vunpack.c.h.b16 %v108
    %v357 = vunpack.c.l.b16 %v109
    %v358 = vunpack.c.h.b16 %v109
    %v359 = vunpack.c.l.b16 %v110
    %v360 = vunpack.c.h.b16 %v110
    %v361 = vunpack.c.l.b16 %v111
    %v362 = vunpack.c.h.b16 %v111
    %v363 = vunpack.c.l.b16 %v112
    %v364 = vunpack.c.h.b16 %v112
    %v365 = vunpack.c.l.b16 %v113
    %v366 = vunpack.c.h.b16 %v113
    %v367 = vunpack.c.l.b16 %v114
    %v368 = vunpack.c.h.b16 %v114
    %v369 = vunpack.c.l.b16 %v115
    %v370 = vunpack.c.h.b16 %v115
    %v371 = vunpack.c.l.b16 %v116
    %v372 = vunpack.c.h.b16 %v116
    %v373 = vunpack.c.l.b16 %v117
    %v374 = vunpack.c.h.b16 %v117
    %v375 = vunpack.c.l.b16 %v118
    %v376 = vunpack.c.h.b16 %v118
    %v377 = vunpack.c.l.b16 %v119
    %v378 = vunpack.c.h.b16 %v119
    %v379 = vunpack.c.l.b16 %v120
    %v380 = vunpack.c.h.b16 %v120
    %v381 = vunpack.c.l.b16 %v121
    %v382 = vunpack.c.h.b16 %v121
    %v383 = vunpack.c.l.b16 %v122
    %v384 = vunpack.c.h.b16 %v122
    %v385 = vunpack.c.l.b16 %v123
    %v386 = vunpack.c.h.b16 %v123
    %v387 = vunpack.c.l.b16 %v124
    %v388 = vunpack.c.h.b16 %v124
    %v389 = vunpack.c.l.b16 %v125
    %v390 = vunpack.c.h.b16 %v125
    %v391 = vunpack.c.l.b16 %v126
    %v392 = vunpack.c.h.b16 %v126
    %v393 = vunpack.c.l.b16 %v127
    %v394 = vunpack.c.h.b16 %v127
    %v395 = vunpack.c.l.b16 %v128
    %v396 = vunpack.c.h.b16 %v128
    %v397 = vunpack.c.l.b16 %v129
    %v398 = vunpack.c.h.b16 %v129
    %v399 = vunpack.c.l.b16 %v130
    %v400 = vunpack.c.h.b16 %v130
    %v401 = vunpack.c.l.b16 %v131
    %v402 = vunpack.c.h.b16 %v131
    %v403 = vunpack.c.l.b16 %v132
    %v404 = vunpack.c.h.b16 %v132
    %v405 = vunpack.c.l.b16 %v133
    %v406 = vunpack.c.h.b16 %v133
    %v407 = vunpack.c.l.b16 %v134
    %v408 = vunpack.c.h.b16 %v134
    %v409 = vpack.c.b16 %v289, %v281
    %v410 = vpack.c.b16 %v290, %v282
    %v411 = vpack.c.b16 %v291, %v283
    %v412 = vpack.c.b16 %v292, %v284
    %v413 = vpack.c.b16 %v293, %v285
    %v414 = vpack.c.b16 %v294, %v286
    %v415 = vpack.c.b16 %v295, %v287
    %v416 = vpack.c.b16 %v296, %v288
    %v417 = vpack.c.b16 %v305, %v297
    %v418 = vpack.c.b16 %v306, %v298
    %v419 = vpack.c.b16 %v307, %v299
    %v420 = vpack.c.b16 %v308, %v300
    %v421 = vpack.c.b16 %v309, %v301
    %v422 = vpack.c.b16 %v310, %v302
    %v423 = vpack.c.b16 %v311, %v303
    %v424 = vpack.c.b16 %v312, %v304
    %v425 = vpack.c.b16 %v321, %v313
    %v426 = vpack.c.b16 %v322, %v314
    %v427 = vpack.c.b16 %v323, %v315
    %v428 = vpack.c.b16 %v324, %v316
    %v429 = vpack.c.b16 %v325, %v317
    %v430 = vpack.c.b16 %v326, %v318
    %v431 = vpack.c.b16 %v327, %v319
    %v432 = vpack.c.b16 %v328, %v320
    %v433 = vpack.c.b16 %v337, %v329
    %v434 = vpack.c.b16 %v338, %v330
    %v435 = vpack.c.b16 %v339, %v331
    %v436 = vpack.c.b16 %v340, %v332
    %v437 = vpack.c.b16 %v341, %v333
    %v438 = vpack.c.b16 %v342, %v334
    %v439 = vpack.c.b16 %v343, %v335
    %v440 = vpack.c.b16 %v344, %v336
    %v441 = vpack.c.b16 %v353, %v345
    %v442 = vpack.c.b16 %v354, %v346
    %v443 = vpack.c.b16 %v355, %v347
    %v444 = vpack.c.b16 %v356, %v348
    %v445 = vpack.c.b16 %v357, %v349
    %v446 = vpack.c.b16 %v358, %v350
    %v447 = vpack.c.b16 %v359, %v351
    %v448 = vpack.c.b16 %v360, %v352
    %v449 = vpack.c.b16 %v369, %v361
    %v450 = vpack.c.b16 %v370, %v362
    %v451 = vpack.c.b16 %v371, %v363
    %v452 = vpack.c.b16 %v372, %v364
    %v453 = vpack.c.b16 %v373, %v365
    %v454 = vpack.c.b16 %v374, %v366
    %v455 = vpack.c.b16 %v375, %v367
    %v456 = vpack.c.b16 %v376, %v368
    %v457 = vpack.c.b16 %v385, %v377
    %v458 = vpack.c.b16 %v386, %v378
    %v459 = vpack.c.b16 %v387, %v379
    %v460 = vpack.c.b16 %v388, %v380
    %v461 = vpack.c.b16 %v389, %v381
    %v462 = vpack.c.b16 %v390, %v382
    %v463 = vpack.c.b16 %v391, %v383
    %v464 = vpack.c.b16 %v392, %v384
    %v465 = vpack.c.b16 %v401, %v393
    %v466 = vpack.c.b16 %v402, %v394
    %v467 = vpack.c.b16 %v403, %v395
    %v468 = vpack.c.b16 %v404, %v396
    %v469 = vpack.c.b16 %v405, %v397
    %v470 = vpack.c.b16 %v406, %v398
    %v471 = vpack.c.b16 %v407, %v399
    %v472 = vpack.c.b16 %v408, %v400
    %537 = vmatpush.bf16.msra.mxu0 %v465
    %538 = vmatpush.bf16.msra.mxu0 %v457
    %539 = vmatpush.bf16.msra.mxu0 %v449
    %540 = vmatpush.bf16.msra.mxu0 %v441
    %541 = vmatpush.bf16.msra.mxu0 %v433
    %542 = vmatpush.bf16.msra.mxu0 %v425
    %543 = vmatpush.bf16.msra.mxu0 %v417
    %544 = vmatpush.bf16.msra.mxu0 %v409
    %545 = vmatmul.bf16.gmra.mxu0 %v189
    %v546 = vpop.f32.mrf.mxu0
    %v547 = vadd.f32 0.0, %v546
    %v548 = vpop.f32.mrf.mxu0
    %v549 = vadd.f32 0.0, %v548
    %550 = vmatmul.bf16.gmra.mxu0 %v190
    %v551 = vpop.f32.mrf.mxu0
    %v552 = vadd.f32 0.0, %v551
    %v553 = vpop.f32.mrf.mxu0
    %v554 = vadd.f32 0.0, %v553
    %555 = vmatmul.bf16.gmra.mxu0 %v191
    %v556 = vpop.f32.mrf.mxu0
    %v557 = vadd.f32 0.0, %v556
    %v558 = vpop.f32.mrf.mxu0
    %v559 = vadd.f32 0.0, %v558
    %560 = vmatmul.bf16.gmra.mxu0 %v192
    %v561 = vpop.f32.mrf.mxu0
    %v562 = vadd.f32 0.0, %v561
    %v563 = vpop.f32.mrf.mxu0
    %v564 = vadd.f32 0.0, %v563
    %565 = vmatmul.bf16.gmra.mxu0 %v193
    %v566 = vpop.f32.mrf.mxu0
    %v567 = vadd.f32 0.0, %v566
    %v568 = vpop.f32.mrf.mxu0
    %v569 = vadd.f32 0.0, %v568
    %570 = vmatmul.bf16.gmra.mxu0 %v194
    %v571 = vpop.f32.mrf.mxu0
    %v572 = vadd.f32 0.0, %v571
    %v573 = vpop.f32.mrf.mxu0
    %v574 = vadd.f32 0.0, %v573
    %575 = vmatmul.bf16.gmra.mxu0 %v195
    %v576 = vpop.f32.mrf.mxu0
    %v577 = vadd.f32 0.0, %v576
    %v578 = vpop.f32.mrf.mxu0
    %v579 = vadd.f32 0.0, %v578
    %580 = vmatmul.bf16.gmra.mxu0 %v196
    %v581 = vpop.f32.mrf.mxu0
    %v582 = vadd.f32 0.0, %v581
    %v583 = vpop.f32.mrf.mxu0
    %v584 = vadd.f32 0.0, %v583
    %585 = vmatmul.bf16.gmra.mxu0 %v197
    %v586 = vpop.f32.mrf.mxu0
    %v587 = vadd.f32 0.0, %v586
    %v588 = vpop.f32.mrf.mxu0
    %v589 = vadd.f32 0.0, %v588
    %590 = vmatmul.bf16.gmra.mxu0 %v198
    %v591 = vpop.f32.mrf.mxu0
    %v592 = vadd.f32 0.0, %v591
    %v593 = vpop.f32.mrf.mxu0
    %v594 = vadd.f32 0.0, %v593
    %595 = vmatmul.bf16.gmra.mxu0 %v199
    %v596 = vpop.f32.mrf.mxu0
    %v597 = vadd.f32 0.0, %v596
    %v598 = vpop.f32.mrf.mxu0
    %v599 = vadd.f32 0.0, %v598
    %600 = vmatmul.bf16.gmra.mxu0 %v200
    %v601 = vpop.f32.mrf.mxu0
    %v602 = vadd.f32 0.0, %v601
    %v603 = vpop.f32.mrf.mxu0
    %v604 = vadd.f32 0.0, %v603
    %605 = vmatmul.bf16.gmra.mxu0 %v201
    %v606 = vpop.f32.mrf.mxu0
    %v607 = vadd.f32 0.0, %v606
    %v608 = vpop.f32.mrf.mxu0
    %v609 = vadd.f32 0.0, %v608
    %610 = vmatmul.bf16.gmra.mxu0 %v202
    %v611 = vpop.f32.mrf.mxu0
    %v612 = vadd.f32 0.0, %v611
    %v613 = vpop.f32.mrf.mxu0
    %614 = vdwg.mxu0
    %615 = vmatpush.bf16.msra.mxu0 %v466
    %616 = vmatpush.bf16.msra.mxu0 %v458
    %617 = vmatpush.bf16.msra.mxu0 %v450
    %618 = vmatpush.bf16.msra.mxu0 %v442
    %619 = vmatpush.bf16.msra.mxu0 %v434
    %620 = vmatpush.bf16.msra.mxu0 %v426
    %621 = vmatpush.bf16.msra.mxu0 %v418
    %622 = vmatpush.bf16.msra.mxu0 %v410
    %623 = vmatmul.bf16.gmra.mxu0 %v189
    %v624 = vpop.f32.mrf.mxu0
    %v625 = vadd.f32 0.0, %v624
    %v626 = vpop.f32.mrf.mxu0
    %v627 = vadd.f32 0.0, %v626
    %628 = vmatmul.bf16.gmra.mxu0 %v190
    %v629 = vpop.f32.mrf.mxu0
    %v630 = vadd.f32 0.0, %v629
    %v631 = vpop.f32.mrf.mxu0
    %v632 = vadd.f32 0.0, %v631
    %633 = vmatmul.bf16.gmra.mxu0 %v191
    %v634 = vpop.f32.mrf.mxu0
    %v635 = vadd.f32 0.0, %v634
    %v636 = vpop.f32.mrf.mxu0
    %v637 = vadd.f32 0.0, %v636
    %638 = vmatmul.bf16.gmra.mxu0 %v192
    %v639 = vpop.f32.mrf.mxu0
    %v640 = vadd.f32 0.0, %v639
    %v641 = vpop.f32.mrf.mxu0
    %v642 = vadd.f32 0.0, %v641
    %643 = vmatmul.bf16.gmra.mxu0 %v193
    %v644 = vpop.f32.mrf.mxu0
    %v645 = vadd.f32 0.0, %v644
    %v646 = vpop.f32.mrf.mxu0
    %v647 = vadd.f32 0.0, %v646
    %648 = vmatmul.bf16.gmra.mxu0 %v194
    %v649 = vpop.f32.mrf.mxu0
    %v650 = vadd.f32 0.0, %v649
    %v651 = vpop.f32.mrf.mxu0
    %v652 = vadd.f32 0.0, %v651
    %653 = vmatmul.bf16.gmra.mxu0 %v195
    %v654 = vpop.f32.mrf.mxu0
    %v655 = vadd.f32 0.0, %v654
    %v656 = vpop.f32.mrf.mxu0
    %v657 = vadd.f32 0.0, %v656
    %658 = vmatmul.bf16.gmra.mxu0 %v196
    %v659 = vpop.f32.mrf.mxu0
    %v660 = vadd.f32 0.0, %v659
    %v661 = vpop.f32.mrf.mxu0
    %v662 = vadd.f32 0.0, %v661
    %663 = vmatmul.bf16.gmra.mxu0 %v197
    %v664 = vpop.f32.mrf.mxu0
    %v665 = vadd.f32 0.0, %v664
    %v666 = vpop.f32.mrf.mxu0
    %v667 = vadd.f32 0.0, %v666
    %668 = vmatmul.bf16.gmra.mxu0 %v198
    %v669 = vpop.f32.mrf.mxu0
    %v670 = vadd.f32 0.0, %v669
    %v671 = vpop.f32.mrf.mxu0
    %v672 = vadd.f32 0.0, %v671
    %673 = vmatmul.bf16.gmra.mxu0 %v199
    %v674 = vpop.f32.mrf.mxu0
    %v675 = vadd.f32 0.0, %v674
    %v676 = vpop.f32.mrf.mxu0
    %v677 = vadd.f32 0.0, %v676
    %678 = vmatmul.bf16.gmra.mxu0 %v200
    %v679 = vpop.f32.mrf.mxu0
    %v680 = vadd.f32 0.0, %v679
    %v681 = vpop.f32.mrf.mxu0
    %v682 = vadd.f32 0.0, %v681
    %683 = vmatmul.bf16.gmra.mxu0 %v201
    %v684 = vpop.f32.mrf.mxu0
    %v685 = vadd.f32 0.0, %v684
    %v686 = vpop.f32.mrf.mxu0
    %v687 = vadd.f32 0.0, %v686
    %688 = vmatmul.bf16.gmra.mxu0 %v202
    %v689 = vpop.f32.mrf.mxu0
    %v690 = vadd.f32 0.0, %v689
    %v691 = vpop.f32.mrf.mxu0
    %692 = vdwg.mxu0
    %693 = vmatpush.bf16.msra.mxu0 %v467
    %694 = vmatpush.bf16.msra.mxu0 %v459
    %695 = vmatpush.bf16.msra.mxu0 %v451
    %696 = vmatpush.bf16.msra.mxu0 %v443
    %697 = vmatpush.bf16.msra.mxu0 %v435
    %698 = vmatpush.bf16.msra.mxu0 %v427
    %699 = vmatpush.bf16.msra.mxu0 %v419
    %700 = vmatpush.bf16.msra.mxu0 %v411
    %701 = vmatmul.bf16.gmra.mxu0 %v189
    %v702 = vpop.f32.mrf.mxu0
    %v703 = vadd.f32 0.0, %v702
    %v704 = vpop.f32.mrf.mxu0
    %v705 = vadd.f32 0.0, %v704
    %706 = vmatmul.bf16.gmra.mxu0 %v190
    %v707 = vpop.f32.mrf.mxu0
    %v708 = vadd.f32 0.0, %v707
    %v709 = vpop.f32.mrf.mxu0
    %v710 = vadd.f32 0.0, %v709
    %711 = vmatmul.bf16.gmra.mxu0 %v191
    %v712 = vpop.f32.mrf.mxu0
    %v713 = vadd.f32 0.0, %v712
    %v714 = vpop.f32.mrf.mxu0
    %v715 = vadd.f32 0.0, %v714
    %716 = vmatmul.bf16.gmra.mxu0 %v192
    %v717 = vpop.f32.mrf.mxu0
    %v718 = vadd.f32 0.0, %v717
    %v719 = vpop.f32.mrf.mxu0
    %v720 = vadd.f32 0.0, %v719
    %721 = vmatmul.bf16.gmra.mxu0 %v193
    %v722 = vpop.f32.mrf.mxu0
    %v723 = vadd.f32 0.0, %v722
    %v724 = vpop.f32.mrf.mxu0
    %v725 = vadd.f32 0.0, %v724
    %726 = vmatmul.bf16.gmra.mxu0 %v194
    %v727 = vpop.f32.mrf.mxu0
    %v728 = vadd.f32 0.0, %v727
    %v729 = vpop.f32.mrf.mxu0
    %v730 = vadd.f32 0.0, %v729
    %731 = vmatmul.bf16.gmra.mxu0 %v195
    %v732 = vpop.f32.mrf.mxu0
    %v733 = vadd.f32 0.0, %v732
    %v734 = vpop.f32.mrf.mxu0
    %v735 = vadd.f32 0.0, %v734
    %736 = vmatmul.bf16.gmra.mxu0 %v196
    %v737 = vpop.f32.mrf.mxu0
    %v738 = vadd.f32 0.0, %v737
    %v739 = vpop.f32.mrf.mxu0
    %v740 = vadd.f32 0.0, %v739
    %741 = vmatmul.bf16.gmra.mxu0 %v197
    %v742 = vpop.f32.mrf.mxu0
    %v743 = vadd.f32 0.0, %v742
    %v744 = vpop.f32.mrf.mxu0
    %v745 = vadd.f32 0.0, %v744
    %746 = vmatmul.bf16.gmra.mxu0 %v198
    %v747 = vpop.f32.mrf.mxu0
    %v748 = vadd.f32 0.0, %v747
    %v749 = vpop.f32.mrf.mxu0
    %v750 = vadd.f32 0.0, %v749
    %751 = vmatmul.bf16.gmra.mxu0 %v199
    %v752 = vpop.f32.mrf.mxu0
    %v753 = vadd.f32 0.0, %v752
    %v754 = vpop.f32.mrf.mxu0
    %v755 = vadd.f32 0.0, %v754
    %756 = vmatmul.bf16.gmra.mxu0 %v200
    %v757 = vpop.f32.mrf.mxu0
    %v758 = vadd.f32 0.0, %v757
    %v759 = vpop.f32.mrf.mxu0
    %v760 = vadd.f32 0.0, %v759
    %761 = vmatmul.bf16.gmra.mxu0 %v201
    %v762 = vpop.f32.mrf.mxu0
    %v763 = vadd.f32 0.0, %v762
    %v764 = vpop.f32.mrf.mxu0
    %v765 = vadd.f32 0.0, %v764
    %766 = vmatmul.bf16.gmra.mxu0 %v202
    %v767 = vpop.f32.mrf.mxu0
    %v768 = vadd.f32 0.0, %v767
    %v769 = vpop.f32.mrf.mxu0
    %770 = vdwg.mxu0
    %771 = vmatpush.bf16.msra.mxu0 %v468
    %772 = vmatpush.bf16.msra.mxu0 %v460
    %773 = vmatpush.bf16.msra.mxu0 %v452
    %774 = vmatpush.bf16.msra.mxu0 %v444
    %775 = vmatpush.bf16.msra.mxu0 %v436
    %776 = vmatpush.bf16.msra.mxu0 %v428
    %777 = vmatpush.bf16.msra.mxu0 %v420
    %778 = vmatpush.bf16.msra.mxu0 %v412
    %779 = vmatmul.bf16.gmra.mxu0 %v189
    %v780 = vpop.f32.mrf.mxu0
    %v781 = vadd.f32 0.0, %v780
    %v782 = vpop.f32.mrf.mxu0
    %v783 = vadd.f32 0.0, %v782
    %784 = vmatmul.bf16.gmra.mxu0 %v190
    %v785 = vpop.f32.mrf.mxu0
    %v786 = vadd.f32 0.0, %v785
    %v787 = vpop.f32.mrf.mxu0
    %v788 = vadd.f32 0.0, %v787
    %789 = vmatmul.bf16.gmra.mxu0 %v191
    %v790 = vpop.f32.mrf.mxu0
    %v791 = vadd.f32 0.0, %v790
    %v792 = vpop.f32.mrf.mxu0
    %v793 = vadd.f32 0.0, %v792
    %794 = vmatmul.bf16.gmra.mxu0 %v192
    %v795 = vpop.f32.mrf.mxu0
    %v796 = vadd.f32 0.0, %v795
    %v797 = vpop.f32.mrf.mxu0
    %v798 = vadd.f32 0.0, %v797
    %799 = vmatmul.bf16.gmra.mxu0 %v193
    %v800 = vpop.f32.mrf.mxu0
    %v801 = vadd.f32 0.0, %v800
    %v802 = vpop.f32.mrf.mxu0
    %v803 = vadd.f32 0.0, %v802
    %804 = vmatmul.bf16.gmra.mxu0 %v194
    %v805 = vpop.f32.mrf.mxu0
    %v806 = vadd.f32 0.0, %v805
    %v807 = vpop.f32.mrf.mxu0
    %v808 = vadd.f32 0.0, %v807
    %809 = vmatmul.bf16.gmra.mxu0 %v195
    %v810 = vpop.f32.mrf.mxu0
    %v811 = vadd.f32 0.0, %v810
    %v812 = vpop.f32.mrf.mxu0
    %v813 = vadd.f32 0.0, %v812
    %814 = vmatmul.bf16.gmra.mxu0 %v196
    %v815 = vpop.f32.mrf.mxu0
    %v816 = vadd.f32 0.0, %v815
    %v817 = vpop.f32.mrf.mxu0
    %v818 = vadd.f32 0.0, %v817
    %819 = vmatmul.bf16.gmra.mxu0 %v197
    %v820 = vpop.f32.mrf.mxu0
    %v821 = vadd.f32 0.0, %v820
    %v822 = vpop.f32.mrf.mxu0
    %v823 = vadd.f32 0.0, %v822
    %824 = vmatmul.bf16.gmra.mxu0 %v198
    %v825 = vpop.f32.mrf.mxu0
    %v826 = vadd.f32 0.0, %v825
    %v827 = vpop.f32.mrf.mxu0
    %v828 = vadd.f32 0.0, %v827
    %829 = vmatmul.bf16.gmra.mxu0 %v199
    %v830 = vpop.f32.mrf.mxu0
    %v831 = vadd.f32 0.0, %v830
    %v832 = vpop.f32.mrf.mxu0
    %v833 = vadd.f32 0.0, %v832
    %834 = vmatmul.bf16.gmra.mxu0 %v200
    %v835 = vpop.f32.mrf.mxu0
    %v836 = vadd.f32 0.0, %v835
    %v837 = vpop.f32.mrf.mxu0
    %v838 = vadd.f32 0.0, %v837
    %839 = vmatmul.bf16.gmra.mxu0 %v201
    %v840 = vpop.f32.mrf.mxu0
    %v841 = vadd.f32 0.0, %v840
    %v842 = vpop.f32.mrf.mxu0
    %v843 = vadd.f32 0.0, %v842
    %844 = vmatmul.bf16.gmra.mxu0 %v202
    %v845 = vpop.f32.mrf.mxu0
    %v846 = vadd.f32 0.0, %v845
    %v847 = vpop.f32.mrf.mxu0
    %848 = vdwg.mxu0
    %849 = vmatpush.bf16.msra.mxu0 %v469
    %850 = vmatpush.bf16.msra.mxu0 %v461
    %851 = vmatpush.bf16.msra.mxu0 %v453
    %852 = vmatpush.bf16.msra.mxu0 %v445
    %853 = vmatpush.bf16.msra.mxu0 %v437
    %854 = vmatpush.bf16.msra.mxu0 %v429
    %855 = vmatpush.bf16.msra.mxu0 %v421
    %856 = vmatpush.bf16.msra.mxu0 %v413
    %857 = vmatmul.bf16.gmra.mxu0 %v189
    %v858 = vpop.f32.mrf.mxu0
    %v859 = vadd.f32 0.0, %v858
    %v860 = vpop.f32.mrf.mxu0
    %v861 = vadd.f32 0.0, %v860
    %862 = vmatmul.bf16.gmra.mxu0 %v190
    %v863 = vpop.f32.mrf.mxu0
    %v864 = vadd.f32 0.0, %v863
    %v865 = vpop.f32.mrf.mxu0
    %v866 = vadd.f32 0.0, %v865
    %867 = vmatmul.bf16.gmra.mxu0 %v191
    %v868 = vpop.f32.mrf.mxu0
    %v869 = vadd.f32 0.0, %v868
    %v870 = vpop.f32.mrf.mxu0
    %v871 = vadd.f32 0.0, %v870
    %872 = vmatmul.bf16.gmra.mxu0 %v192
    %v873 = vpop.f32.mrf.mxu0
    %v874 = vadd.f32 0.0, %v873
    %v875 = vpop.f32.mrf.mxu0
    %v876 = vadd.f32 0.0, %v875
    %877 = vmatmul.bf16.gmra.mxu0 %v193
    %v878 = vpop.f32.mrf.mxu0
    %v879 = vadd.f32 0.0, %v878
    %v880 = vpop.f32.mrf.mxu0
    %v881 = vadd.f32 0.0, %v880
    %882 = vmatmul.bf16.gmra.mxu0 %v194
    %v883 = vpop.f32.mrf.mxu0
    %v884 = vadd.f32 0.0, %v883
    %v885 = vpop.f32.mrf.mxu0
    %v886 = vadd.f32 0.0, %v885
    %887 = vmatmul.bf16.gmra.mxu0 %v195
    %v888 = vpop.f32.mrf.mxu0
    %v889 = vadd.f32 0.0, %v888
    %v890 = vpop.f32.mrf.mxu0
    %v891 = vadd.f32 0.0, %v890
    %892 = vmatmul.bf16.gmra.mxu0 %v196
    %v893 = vpop.f32.mrf.mxu0
    %v894 = vadd.f32 0.0, %v893
    %v895 = vpop.f32.mrf.mxu0
    %v896 = vadd.f32 0.0, %v895
    %897 = vmatmul.bf16.gmra.mxu0 %v197
    %v898 = vpop.f32.mrf.mxu0
    %v899 = vadd.f32 0.0, %v898
    %v900 = vpop.f32.mrf.mxu0
    %v901 = vadd.f32 0.0, %v900
    %902 = vmatmul.bf16.gmra.mxu0 %v198
    %v903 = vpop.f32.mrf.mxu0
    %v904 = vadd.f32 0.0, %v903
    %v905 = vpop.f32.mrf.mxu0
    %v906 = vadd.f32 0.0, %v905
    %907 = vmatmul.bf16.gmra.mxu0 %v199
    %v908 = vpop.f32.mrf.mxu0
    %v909 = vadd.f32 0.0, %v908
    %v910 = vpop.f32.mrf.mxu0
    %v911 = vadd.f32 0.0, %v910
    %912 = vmatmul.bf16.gmra.mxu0 %v200
    %v913 = vpop.f32.mrf.mxu0
    %v914 = vadd.f32 0.0, %v913
    %v915 = vpop.f32.mrf.mxu0
    %v916 = vadd.f32 0.0, %v915
    %917 = vmatmul.bf16.gmra.mxu0 %v201
    %v918 = vpop.f32.mrf.mxu0
    %v919 = vadd.f32 0.0, %v918
    %v920 = vpop.f32.mrf.mxu0
    %v921 = vadd.f32 0.0, %v920
    %922 = vmatmul.bf16.gmra.mxu0 %v202
    %v923 = vpop.f32.mrf.mxu0
    %v924 = vadd.f32 0.0, %v923
    %v925 = vpop.f32.mrf.mxu0
    %926 = vdwg.mxu0
    %927 = vmatpush.bf16.msra.mxu0 %v470
    %928 = vmatpush.bf16.msra.mxu0 %v462
    %929 = vmatpush.bf16.msra.mxu0 %v454
    %930 = vmatpush.bf16.msra.mxu0 %v446
    %931 = vmatpush.bf16.msra.mxu0 %v438
    %932 = vmatpush.bf16.msra.mxu0 %v430
    %933 = vmatpush.bf16.msra.mxu0 %v422
    %934 = vmatpush.bf16.msra.mxu0 %v414
    %935 = vmatmul.bf16.gmra.mxu0 %v189
    %v936 = vpop.f32.mrf.mxu0
    %v937 = vadd.f32 0.0, %v936
    %v938 = vpop.f32.mrf.mxu0
    %v939 = vadd.f32 0.0, %v938
    %940 = vmatmul.bf16.gmra.mxu0 %v190
    %v941 = vpop.f32.mrf.mxu0
    %v942 = vadd.f32 0.0, %v941
    %v943 = vpop.f32.mrf.mxu0
    %v944 = vadd.f32 0.0, %v943
    %945 = vmatmul.bf16.gmra.mxu0 %v191
    %v946 = vpop.f32.mrf.mxu0
    %v947 = vadd.f32 0.0, %v946
    %v948 = vpop.f32.mrf.mxu0
    %v949 = vadd.f32 0.0, %v948
    %950 = vmatmul.bf16.gmra.mxu0 %v192
    %v951 = vpop.f32.mrf.mxu0
    %v952 = vadd.f32 0.0, %v951
    %v953 = vpop.f32.mrf.mxu0
    %v954 = vadd.f32 0.0, %v953
    %955 = vmatmul.bf16.gmra.mxu0 %v193
    %v956 = vpop.f32.mrf.mxu0
    %v957 = vadd.f32 0.0, %v956
    %v958 = vpop.f32.mrf.mxu0
    %v959 = vadd.f32 0.0, %v958
    %960 = vmatmul.bf16.gmra.mxu0 %v194
    %v961 = vpop.f32.mrf.mxu0
    %v962 = vadd.f32 0.0, %v961
    %v963 = vpop.f32.mrf.mxu0
    %v964 = vadd.f32 0.0, %v963
    %965 = vmatmul.bf16.gmra.mxu0 %v195
    %v966 = vpop.f32.mrf.mxu0
    %v967 = vadd.f32 0.0, %v966
    %v968 = vpop.f32.mrf.mxu0
    %v969 = vadd.f32 0.0, %v968
    %970 = vmatmul.bf16.gmra.mxu0 %v196
    %v971 = vpop.f32.mrf.mxu0
    %v972 = vadd.f32 0.0, %v971
    %v973 = vpop.f32.mrf.mxu0
    %v974 = vadd.f32 0.0, %v973
    %975 = vmatmul.bf16.gmra.mxu0 %v197
    %v976 = vpop.f32.mrf.mxu0
    %v977 = vadd.f32 0.0, %v976
    %v978 = vpop.f32.mrf.mxu0
    %v979 = vadd.f32 0.0, %v978
    %980 = vmatmul.bf16.gmra.mxu0 %v198
    %v981 = vpop.f32.mrf.mxu0
    %v982 = vadd.f32 0.0, %v981
    %v983 = vpop.f32.mrf.mxu0
    %v984 = vadd.f32 0.0, %v983
    %985 = vmatmul.bf16.gmra.mxu0 %v199
    %v986 = vpop.f32.mrf.mxu0
    %v987 = vadd.f32 0.0, %v986
    %v988 = vpop.f32.mrf.mxu0
    %v989 = vadd.f32 0.0, %v988
    %990 = vmatmul.bf16.gmra.mxu0 %v200
    %v991 = vpop.f32.mrf.mxu0
    %v992 = vadd.f32 0.0, %v991
    %v993 = vpop.f32.mrf.mxu0
    %v994 = vadd.f32 0.0, %v993
    %995 = vmatmul.bf16.gmra.mxu0 %v201
    %v996 = vpop.f32.mrf.mxu0
    %v997 = vadd.f32 0.0, %v996
    %v998 = vpop.f32.mrf.mxu0
    %v999 = vadd.f32 0.0, %v998
    %1000 = vmatmul.bf16.gmra.mxu0 %v202
    %v1001 = vpop.f32.mrf.mxu0
    %v1002 = vadd.f32 0.0, %v1001
    %v1003 = vpop.f32.mrf.mxu0
    %1004 = vdwg.mxu0
    %1005 = vmatpush.bf16.msra.mxu0 %v471
    %1006 = vmatpush.bf16.msra.mxu0 %v463
    %1007 = vmatpush.bf16.msra.mxu0 %v455
    %1008 = vmatpush.bf16.msra.mxu0 %v447
    %1009 = vmatpush.bf16.msra.mxu0 %v439
    %1010 = vmatpush.bf16.msra.mxu0 %v431
    %1011 = vmatpush.bf16.msra.mxu0 %v423
    %1012 = vmatpush.bf16.msra.mxu0 %v415
    %1013 = vmatmul.bf16.gmra.mxu0 %v189
    %v1014 = vpop.f32.mrf.mxu0
    %v1015 = vadd.f32 0.0, %v1014
    %v1016 = vpop.f32.mrf.mxu0
    %v1017 = vadd.f32 0.0, %v1016
    %1018 = vmatmul.bf16.gmra.mxu0 %v190
    %v1019 = vpop.f32.mrf.mxu0
    %v1020 = vadd.f32 0.0, %v1019
    %v1021 = vpop.f32.mrf.mxu0
    %v1022 = vadd.f32 0.0, %v1021
    %1023 = vmatmul.bf16.gmra.mxu0 %v191
    %v1024 = vpop.f32.mrf.mxu0
    %v1025 = vadd.f32 0.0, %v1024
    %v1026 = vpop.f32.mrf.mxu0
    %v1027 = vadd.f32 0.0, %v1026
    %1028 = vmatmul.bf16.gmra.mxu0 %v192
    %v1029 = vpop.f32.mrf.mxu0
    %v1030 = vadd.f32 0.0, %v1029
    %v1031 = vpop.f32.mrf.mxu0
    %v1032 = vadd.f32 0.0, %v1031
    %1033 = vmatmul.bf16.gmra.mxu0 %v193
    %v1034 = vpop.f32.mrf.mxu0
    %v1035 = vadd.f32 0.0, %v1034
    %v1036 = vpop.f32.mrf.mxu0
    %v1037 = vadd.f32 0.0, %v1036
    %1038 = vmatmul.bf16.gmra.mxu0 %v194
    %v1039 = vpop.f32.mrf.mxu0
    %v1040 = vadd.f32 0.0, %v1039
    %v1041 = vpop.f32.mrf.mxu0
    %v1042 = vadd.f32 0.0, %v1041
    %1043 = vmatmul.bf16.gmra.mxu0 %v195
    %v1044 = vpop.f32.mrf.mxu0
    %v1045 = vadd.f32 0.0, %v1044
    %v1046 = vpop.f32.mrf.mxu0
    %v1047 = vadd.f32 0.0, %v1046
    %1048 = vmatmul.bf16.gmra.mxu0 %v196
    %v1049 = vpop.f32.mrf.mxu0
    %v1050 = vadd.f32 0.0, %v1049
    %v1051 = vpop.f32.mrf.mxu0
    %v1052 = vadd.f32 0.0, %v1051
    %1053 = vmatmul.bf16.gmra.mxu0 %v197
    %v1054 = vpop.f32.mrf.mxu0
    %v1055 = vadd.f32 0.0, %v1054
    %v1056 = vpop.f32.mrf.mxu0
    %v1057 = vadd.f32 0.0, %v1056
    %1058 = vmatmul.bf16.gmra.mxu0 %v198
    %v1059 = vpop.f32.mrf.mxu0
    %v1060 = vadd.f32 0.0, %v1059
    %v1061 = vpop.f32.mrf.mxu0
    %v1062 = vadd.f32 0.0, %v1061
    %1063 = vmatmul.bf16.gmra.mxu0 %v199
    %v1064 = vpop.f32.mrf.mxu0
    %v1065 = vadd.f32 0.0, %v1064
    %v1066 = vpop.f32.mrf.mxu0
    %v1067 = vadd.f32 0.0, %v1066
    %1068 = vmatmul.bf16.gmra.mxu0 %v200
    %v1069 = vpop.f32.mrf.mxu0
    %v1070 = vadd.f32 0.0, %v1069
    %v1071 = vpop.f32.mrf.mxu0
    %v1072 = vadd.f32 0.0, %v1071
    %1073 = vmatmul.bf16.gmra.mxu0 %v201
    %v1074 = vpop.f32.mrf.mxu0
    %v1075 = vadd.f32 0.0, %v1074
    %v1076 = vpop.f32.mrf.mxu0
    %v1077 = vadd.f32 0.0, %v1076
    %1078 = vmatmul.bf16.gmra.mxu0 %v202
    %v1079 = vpop.f32.mrf.mxu0
    %v1080 = vadd.f32 0.0, %v1079
    %v1081 = vpop.f32.mrf.mxu0
    %1082 = vdwg.mxu0
    %1083 = vmatpush.bf16.msra.mxu0 %v472
    %1084 = vmatpush.bf16.msra.mxu0 %v464
    %1085 = vmatpush.bf16.msra.mxu0 %v456
    %1086 = vmatpush.bf16.msra.mxu0 %v448
    %1087 = vmatpush.bf16.msra.mxu0 %v440
    %1088 = vmatpush.bf16.msra.mxu0 %v432
    %1089 = vmatpush.bf16.msra.mxu0 %v424
    %1090 = vmatpush.bf16.msra.mxu0 %v416
    %1091 = vmatmul.bf16.gmra.mxu0 %v189
    %v1092 = vpop.f32.mrf.mxu0
    %v1093 = vadd.f32 0.0, %v1092
    %v1094 = vpop.f32.mrf.mxu0
    %v1095 = vadd.f32 0.0, %v1094
    %1096 = vmatmul.bf16.gmra.mxu0 %v190
    %v1097 = vpop.f32.mrf.mxu0
    %v1098 = vadd.f32 0.0, %v1097
    %v1099 = vpop.f32.mrf.mxu0
    %v1100 = vadd.f32 0.0, %v1099
    %1101 = vmatmul.bf16.gmra.mxu0 %v191
    %v1102 = vpop.f32.mrf.mxu0
    %v1103 = vadd.f32 0.0, %v1102
    %v1104 = vpop.f32.mrf.mxu0
    %v1105 = vadd.f32 0.0, %v1104
    %1106 = vmatmul.bf16.gmra.mxu0 %v192
    %v1107 = vpop.f32.mrf.mxu0
    %v1108 = vadd.f32 0.0, %v1107
    %v1109 = vpop.f32.mrf.mxu0
    %v1110 = vadd.f32 0.0, %v1109
    %1111 = vmatmul.bf16.gmra.mxu0 %v193
    %v1112 = vpop.f32.mrf.mxu0
    %v1113 = vadd.f32 0.0, %v1112
    %v1114 = vpop.f32.mrf.mxu0
    %v1115 = vadd.f32 0.0, %v1114
    %1116 = vmatmul.bf16.gmra.mxu0 %v194
    %v1117 = vpop.f32.mrf.mxu0
    %v1118 = vadd.f32 0.0, %v1117
    %v1119 = vpop.f32.mrf.mxu0
    %v1120 = vadd.f32 0.0, %v1119
    %1121 = vmatmul.bf16.gmra.mxu0 %v195
    %v1122 = vpop.f32.mrf.mxu0
    %v1123 = vadd.f32 0.0, %v1122
    %v1124 = vpop.f32.mrf.mxu0
    %v1125 = vadd.f32 0.0, %v1124
    %1126 = vmatmul.bf16.gmra.mxu0 %v196
    %v1127 = vpop.f32.mrf.mxu0
    %v1128 = vadd.f32 0.0, %v1127
    %v1129 = vpop.f32.mrf.mxu0
    %v1130 = vadd.f32 0.0, %v1129
    %1131 = vmatmul.bf16.gmra.mxu0 %v197
    %v1132 = vpop.f32.mrf.mxu0
    %v1133 = vadd.f32 0.0, %v1132
    %v1134 = vpop.f32.mrf.mxu0
    %v1135 = vadd.f32 0.0, %v1134
    %1136 = vmatmul.bf16.gmra.mxu0 %v198
    %v1137 = vpop.f32.mrf.mxu0
    %v1138 = vadd.f32 0.0, %v1137
    %v1139 = vpop.f32.mrf.mxu0
    %v1140 = vadd.f32 0.0, %v1139
    %1141 = vmatmul.bf16.gmra.mxu0 %v199
    %v1142 = vpop.f32.mrf.mxu0
    %v1143 = vadd.f32 0.0, %v1142
    %v1144 = vpop.f32.mrf.mxu0
    %v1145 = vadd.f32 0.0, %v1144
    %1146 = vmatmul.bf16.gmra.mxu0 %v200
    %v1147 = vpop.f32.mrf.mxu0
    %v1148 = vadd.f32 0.0, %v1147
    %v1149 = vpop.f32.mrf.mxu0
    %v1150 = vadd.f32 0.0, %v1149
    %1151 = vmatmul.bf16.gmra.mxu0 %v201
    %v1152 = vpop.f32.mrf.mxu0
    %v1153 = vadd.f32 0.0, %v1152
    %v1154 = vpop.f32.mrf.mxu0
    %v1155 = vadd.f32 0.0, %v1154
    %1156 = vmatmul.bf16.gmra.mxu0 %v202
    %v1157 = vpop.f32.mrf.mxu0
    %v1158 = vadd.f32 0.0, %v1157
    %v1159 = vpop.f32.mrf.mxu0
    %1160 = vdwg.mxu0
    %1161 = vst [vmem:[#allocation7] sm:$0xff] %v547
    %1162 = vst [vmem:[#allocation7 + $0x8] sm:$0xff] %v625
    %1163 = vst [vmem:[#allocation7 + $0x10] sm:$0xff] %v703
    %1164 = vst [vmem:[#allocation7 + $0x18] sm:$0xff] %v781
    %1165 = vst [vmem:[#allocation7 + $0x20] sm:$0xff] %v859
    %1166 = vst [vmem:[#allocation7 + $0x28] sm:$0xff] %v937
    %1167 = vst [vmem:[#allocation7 + $0x30] sm:$0xff] %v1015
    %1168 = vst [vmem:[#allocation7 + $0x38] sm:$0xff] %v1093
    %1169 = vst [vmem:[#allocation7 + $0x40] sm:$0xff] %v549
    %1170 = vst [vmem:[#allocation7 + $0x48] sm:$0xff] %v627
    %1171 = vst [vmem:[#allocation7 + $0x50] sm:$0xff] %v705
    %1172 = vst [vmem:[#allocation7 + $0x58] sm:$0xff] %v783
    %1173 = vst [vmem:[#allocation7 + $0x60] sm:$0xff] %v861
    %1174 = vst [vmem:[#allocation7 + $0x68] sm:$0xff] %v939
    %1175 = vst [vmem:[#allocation7 + $0x70] sm:$0xff] %v1017
    %1176 = vst [vmem:[#allocation7 + $0x78] sm:$0xff] %v1095
    %1177 = vst [vmem:[#allocation7 + $0x80] sm:$0xff] %v552
    %1178 = vst [vmem:[#allocation7 + $0x88] sm:$0xff] %v630
    %1179 = vst [vmem:[#allocation7 + $0x90] sm:$0xff] %v708
    %1180 = vst [vmem:[#allocation7 + $0x98] sm:$0xff] %v786
    %1181 = vst [vmem:[#allocation7 + $0xa0] sm:$0xff] %v864
    %1182 = vst [vmem:[#allocation7 + $0xa8] sm:$0xff] %v942
    %1183 = vst [vmem:[#allocation7 + $0xb0] sm:$0xff] %v1020
    %1184 = vst [vmem:[#allocation7 + $0xb8] sm:$0xff] %v1098
    %1185 = vst [vmem:[#allocation7 + $0xc0] sm:$0xff] %v554
    %1186 = vst [vmem:[#allocation7 + $0xc8] sm:$0xff] %v632
    %1187 = vst [vmem:[#allocation7 + $0xd0] sm:$0xff] %v710
    %1188 = vst [vmem:[#allocation7 + $0xd8] sm:$0xff] %v788
    %1189 = vst [vmem:[#allocation7 + $0xe0] sm:$0xff] %v866
    %1190 = vst [vmem:[#allocation7 + $0xe8] sm:$0xff] %v944
    %1191 = vst [vmem:[#allocation7 + $0xf0] sm:$0xff] %v1022
    %1192 = vst [vmem:[#allocation7 + $0xf8] sm:$0xff] %v1100
    %1193 = vst [vmem:[#allocation7 + $0x100] sm:$0xff] %v557
    %1194 = vst [vmem:[#allocation7 + $0x108] sm:$0xff] %v635
    %1195 = vst [vmem:[#allocation7 + $0x110] sm:$0xff] %v713
    %1196 = vst [vmem:[#allocation7 + $0x118] sm:$0xff] %v791
    %1197 = vst [vmem:[#allocation7 + $0x120] sm:$0xff] %v869
    %1198 = vst [vmem:[#allocation7 + $0x128] sm:$0xff] %v947
    %1199 = vst [vmem:[#allocation7 + $0x130] sm:$0xff] %v1025
    %1200 = vst [vmem:[#allocation7 + $0x138] sm:$0xff] %v1103
    %1201 = vst [vmem:[#allocation7 + $0x140] sm:$0xff] %v559
    %1202 = vst [vmem:[#allocation7 + $0x148] sm:$0xff] %v637
    %1203 = vst [vmem:[#allocation7 + $0x150] sm:$0xff] %v715
    %1204 = vst [vmem:[#allocation7 + $0x158] sm:$0xff] %v793
    %1205 = vst [vmem:[#allocation7 + $0x160] sm:$0xff] %v871
    %1206 = vst [vmem:[#allocation7 + $0x168] sm:$0xff] %v949
    %1207 = vst [vmem:[#allocation7 + $0x170] sm:$0xff] %v1027
    %1208 = vst [vmem:[#allocation7 + $0x178] sm:$0xff] %v1105
    %1209 = vst [vmem:[#allocation7 + $0x180] sm:$0xff] %v562
    %1210 = vst [vmem:[#allocation7 + $0x188] sm:$0xff] %v640
    %1211 = vst [vmem:[#allocation7 + $0x190] sm:$0xff] %v718
    %1212 = vst [vmem:[#allocation7 + $0x198] sm:$0xff] %v796
    %1213 = vst [vmem:[#allocation7 + $0x1a0] sm:$0xff] %v874
    %1214 = vst [vmem:[#allocation7 + $0x1a8] sm:$0xff] %v952
    %1215 = vst [vmem:[#allocation7 + $0x1b0] sm:$0xff] %v1030
    %1216 = vst [vmem:[#allocation7 + $0x1b8] sm:$0xff] %v1108
    %1217 = vst [vmem:[#allocation7 + $0x1c0] sm:$0xff] %v564
    %1218 = vst [vmem:[#allocation7 + $0x1c8] sm:$0xff] %v642
    %1219 = vst [vmem:[#allocation7 + $0x1d0] sm:$0xff] %v720
    %1220 = vst [vmem:[#allocation7 + $0x1d8] sm:$0xff] %v798
    %1221 = vst [vmem:[#allocation7 + $0x1e0] sm:$0xff] %v876
    %1222 = vst [vmem:[#allocation7 + $0x1e8] sm:$0xff] %v954
    %1223 = vst [vmem:[#allocation7 + $0x1f0] sm:$0xff] %v1032
    %1224 = vst [vmem:[#allocation7 + $0x1f8] sm:$0xff] %v1110
    %1225 = vst [vmem:[#allocation7 + $0x200] sm:$0xff] %v567
    %1226 = vst [vmem:[#allocation7 + $0x208] sm:$0xff] %v645
    %1227 = vst [vmem:[#allocation7 + $0x210] sm:$0xff] %v723
    %1228 = vst [vmem:[#allocation7 + $0x218] sm:$0xff] %v801
    %1229 = vst [vmem:[#allocation7 + $0x220] sm:$0xff] %v879
    %1230 = vst [vmem:[#allocation7 + $0x228] sm:$0xff] %v957
    %1231 = vst [vmem:[#allocation7 + $0x230] sm:$0xff] %v1035
    %1232 = vst [vmem:[#allocation7 + $0x238] sm:$0xff] %v1113
    %1233 = vst [vmem:[#allocation7 + $0x240] sm:$0xff] %v569
    %1234 = vst [vmem:[#allocation7 + $0x248] sm:$0xff] %v647
    %1235 = vst [vmem:[#allocation7 + $0x250] sm:$0xff] %v725
    %1236 = vst [vmem:[#allocation7 + $0x258] sm:$0xff] %v803
    %1237 = vst [vmem:[#allocation7 + $0x260] sm:$0xff] %v881
    %1238 = vst [vmem:[#allocation7 + $0x268] sm:$0xff] %v959
    %1239 = vst [vmem:[#allocation7 + $0x270] sm:$0xff] %v1037
    %1240 = vst [vmem:[#allocation7 + $0x278] sm:$0xff] %v1115
    %1241 = vst [vmem:[#allocation7 + $0x280] sm:$0xff] %v572
    %1242 = vst [vmem:[#allocation7 + $0x288] sm:$0xff] %v650
    %1243 = vst [vmem:[#allocation7 + $0x290] sm:$0xff] %v728
    %1244 = vst [vmem:[#allocation7 + $0x298] sm:$0xff] %v806
    %1245 = vst [vmem:[#allocation7 + $0x2a0] sm:$0xff] %v884
    %1246 = vst [vmem:[#allocation7 + $0x2a8] sm:$0xff] %v962
    %1247 = vst [vmem:[#allocation7 + $0x2b0] sm:$0xff] %v1040
    %1248 = vst [vmem:[#allocation7 + $0x2b8] sm:$0xff] %v1118
    %1249 = vst [vmem:[#allocation7 + $0x2c0] sm:$0xff] %v574
    %1250 = vst [vmem:[#allocation7 + $0x2c8] sm:$0xff] %v652
    %1251 = vst [vmem:[#allocation7 + $0x2d0] sm:$0xff] %v730
    %1252 = vst [vmem:[#allocation7 + $0x2d8] sm:$0xff] %v808
    %1253 = vst [vmem:[#allocation7 + $0x2e0] sm:$0xff] %v886
    %1254 = vst [vmem:[#allocation7 + $0x2e8] sm:$0xff] %v964
    %1255 = vst [vmem:[#allocation7 + $0x2f0] sm:$0xff] %v1042
    %1256 = vst [vmem:[#allocation7 + $0x2f8] sm:$0xff] %v1120
    %1257 = vst [vmem:[#allocation7 + $0x300] sm:$0xff] %v577
    %1258 = vst [vmem:[#allocation7 + $0x308] sm:$0xff] %v655
    %1259 = vst [vmem:[#allocation7 + $0x310] sm:$0xff] %v733
    %1260 = vst [vmem:[#allocation7 + $0x318] sm:$0xff] %v811
    %1261 = vst [vmem:[#allocation7 + $0x320] sm:$0xff] %v889
    %1262 = vst [vmem:[#allocation7 + $0x328] sm:$0xff] %v967
    %1263 = vst [vmem:[#allocation7 + $0x330] sm:$0xff] %v1045
    %1264 = vst [vmem:[#allocation7 + $0x338] sm:$0xff] %v1123
    %1265 = vst [vmem:[#allocation7 + $0x340] sm:$0xff] %v579
    %1266 = vst [vmem:[#allocation7 + $0x348] sm:$0xff] %v657
    %1267 = vst [vmem:[#allocation7 + $0x350] sm:$0xff] %v735
    %1268 = vst [vmem:[#allocation7 + $0x358] sm:$0xff] %v813
    %1269 = vst [vmem:[#allocation7 + $0x360] sm:$0xff] %v891
    %1270 = vst [vmem:[#allocation7 + $0x368] sm:$0xff] %v969
    %1271 = vst [vmem:[#allocation7 + $0x370] sm:$0xff] %v1047
    %1272 = vst [vmem:[#allocation7 + $0x378] sm:$0xff] %v1125
    %1273 = vst [vmem:[#allocation7 + $0x380] sm:$0xff] %v582
    %1274 = vst [vmem:[#allocation7 + $0x388] sm:$0xff] %v660
    %1275 = vst [vmem:[#allocation7 + $0x390] sm:$0xff] %v738
    %1276 = vst [vmem:[#allocation7 + $0x398] sm:$0xff] %v816
    %1277 = vst [vmem:[#allocation7 + $0x3a0] sm:$0xff] %v894
    %1278 = vst [vmem:[#allocation7 + $0x3a8] sm:$0xff] %v972
    %1279 = vst [vmem:[#allocation7 + $0x3b0] sm:$0xff] %v1050
    %1280 = vst [vmem:[#allocation7 + $0x3b8] sm:$0xff] %v1128
    %1281 = vst [vmem:[#allocation7 + $0x3c0] sm:$0xff] %v584
    %1282 = vst [vmem:[#allocation7 + $0x3c8] sm:$0xff] %v662
    %1283 = vst [vmem:[#allocation7 + $0x3d0] sm:$0xff] %v740
    %1284 = vst [vmem:[#allocation7 + $0x3d8] sm:$0xff] %v818
    %1285 = vst [vmem:[#allocation7 + $0x3e0] sm:$0xff] %v896
    %1286 = vst [vmem:[#allocation7 + $0x3e8] sm:$0xff] %v974
    %1287 = vst [vmem:[#allocation7 + $0x3f0] sm:$0xff] %v1052
    %1288 = vst [vmem:[#allocation7 + $0x3f8] sm:$0xff] %v1130
    %1289 = vst [vmem:[#allocation7 + $0x400] sm:$0xff] %v587
    %1290 = vst [vmem:[#allocation7 + $0x408] sm:$0xff] %v665
    %1291 = vst [vmem:[#allocation7 + $0x410] sm:$0xff] %v743
    %1292 = vst [vmem:[#allocation7 + $0x418] sm:$0xff] %v821
    %1293 = vst [vmem:[#allocation7 + $0x420] sm:$0xff] %v899
    %1294 = vst [vmem:[#allocation7 + $0x428] sm:$0xff] %v977
    %1295 = vst [vmem:[#allocation7 + $0x430] sm:$0xff] %v1055
    %1296 = vst [vmem:[#allocation7 + $0x438] sm:$0xff] %v1133
    %1297 = vst [vmem:[#allocation7 + $0x440] sm:$0xff] %v589
    %1298 = vst [vmem:[#allocation7 + $0x448] sm:$0xff] %v667
    %1299 = vst [vmem:[#allocation7 + $0x450] sm:$0xff] %v745
    %1300 = vst [vmem:[#allocation7 + $0x458] sm:$0xff] %v823
    %1301 = vst [vmem:[#allocation7 + $0x460] sm:$0xff] %v901
    %1302 = vst [vmem:[#allocation7 + $0x468] sm:$0xff] %v979
    %1303 = vst [vmem:[#allocation7 + $0x470] sm:$0xff] %v1057
    %1304 = vst [vmem:[#allocation7 + $0x478] sm:$0xff] %v1135
    %1305 = vst [vmem:[#allocation7 + $0x480] sm:$0xff] %v592
    %1306 = vst [vmem:[#allocation7 + $0x488] sm:$0xff] %v670
    %1307 = vst [vmem:[#allocation7 + $0x490] sm:$0xff] %v748
    %1308 = vst [vmem:[#allocation7 + $0x498] sm:$0xff] %v826
    %1309 = vst [vmem:[#allocation7 + $0x4a0] sm:$0xff] %v904
    %1310 = vst [vmem:[#allocation7 + $0x4a8] sm:$0xff] %v982
    %1311 = vst [vmem:[#allocation7 + $0x4b0] sm:$0xff] %v1060
    %1312 = vst [vmem:[#allocation7 + $0x4b8] sm:$0xff] %v1138
    %1313 = vst [vmem:[#allocation7 + $0x4c0] sm:$0xff] %v594
    %1314 = vst [vmem:[#allocation7 + $0x4c8] sm:$0xff] %v672
    %1315 = vst [vmem:[#allocation7 + $0x4d0] sm:$0xff] %v750
    %1316 = vst [vmem:[#allocation7 + $0x4d8] sm:$0xff] %v828
    %1317 = vst [vmem:[#allocation7 + $0x4e0] sm:$0xff] %v906
    %1318 = vst [vmem:[#allocation7 + $0x4e8] sm:$0xff] %v984
    %1319 = vst [vmem:[#allocation7 + $0x4f0] sm:$0xff] %v1062
    %1320 = vst [vmem:[#allocation7 + $0x4f8] sm:$0xff] %v1140
    %1321 = vst [vmem:[#allocation7 + $0x500] sm:$0xff] %v597
    %1322 = vst [vmem:[#allocation7 + $0x508] sm:$0xff] %v675
    %1323 = vst [vmem:[#allocation7 + $0x510] sm:$0xff] %v753
    %1324 = vst [vmem:[#allocation7 + $0x518] sm:$0xff] %v831
    %1325 = vst [vmem:[#allocation7 + $0x520] sm:$0xff] %v909
    %1326 = vst [vmem:[#allocation7 + $0x528] sm:$0xff] %v987
    %1327 = vst [vmem:[#allocation7 + $0x530] sm:$0xff] %v1065
    %1328 = vst [vmem:[#allocation7 + $0x538] sm:$0xff] %v1143
    %1329 = vst [vmem:[#allocation7 + $0x540] sm:$0xff] %v599
    %1330 = vst [vmem:[#allocation7 + $0x548] sm:$0xff] %v677
    %1331 = vst [vmem:[#allocation7 + $0x550] sm:$0xff] %v755
    %1332 = vst [vmem:[#allocation7 + $0x558] sm:$0xff] %v833
    %1333 = vst [vmem:[#allocation7 + $0x560] sm:$0xff] %v911
    %1334 = vst [vmem:[#allocation7 + $0x568] sm:$0xff] %v989
    %1335 = vst [vmem:[#allocation7 + $0x570] sm:$0xff] %v1067
    %1336 = vst [vmem:[#allocation7 + $0x578] sm:$0xff] %v1145
    %1337 = vst [vmem:[#allocation7 + $0x580] sm:$0xff] %v602
    %1338 = vst [vmem:[#allocation7 + $0x588] sm:$0xff] %v680
    %1339 = vst [vmem:[#allocation7 + $0x590] sm:$0xff] %v758
    %1340 = vst [vmem:[#allocation7 + $0x598] sm:$0xff] %v836
    %1341 = vst [vmem:[#allocation7 + $0x5a0] sm:$0xff] %v914
    %1342 = vst [vmem:[#allocation7 + $0x5a8] sm:$0xff] %v992
    %1343 = vst [vmem:[#allocation7 + $0x5b0] sm:$0xff] %v1070
    %1344 = vst [vmem:[#allocation7 + $0x5b8] sm:$0xff] %v1148
    %1345 = vst [vmem:[#allocation7 + $0x5c0] sm:$0xff] %v604
    %1346 = vst [vmem:[#allocation7 + $0x5c8] sm:$0xff] %v682
    %1347 = vst [vmem:[#allocation7 + $0x5d0] sm:$0xff] %v760
    %1348 = vst [vmem:[#allocation7 + $0x5d8] sm:$0xff] %v838
    %1349 = vst [vmem:[#allocation7 + $0x5e0] sm:$0xff] %v916
    %1350 = vst [vmem:[#allocation7 + $0x5e8] sm:$0xff] %v994
    %1351 = vst [vmem:[#allocation7 + $0x5f0] sm:$0xff] %v1072
    %1352 = vst [vmem:[#allocation7 + $0x5f8] sm:$0xff] %v1150
    %1353 = vst [vmem:[#allocation7 + $0x600] sm:$0xff] %v607
    %1354 = vst [vmem:[#allocation7 + $0x608] sm:$0xff] %v685
    %1355 = vst [vmem:[#allocation7 + $0x610] sm:$0xff] %v763
    %1356 = vst [vmem:[#allocation7 + $0x618] sm:$0xff] %v841
    %1357 = vst [vmem:[#allocation7 + $0x620] sm:$0xff] %v919
    %1358 = vst [vmem:[#allocation7 + $0x628] sm:$0xff] %v997
    %1359 = vst [vmem:[#allocation7 + $0x630] sm:$0xff] %v1075
    %1360 = vst [vmem:[#allocation7 + $0x638] sm:$0xff] %v1153
    %1361 = vst [vmem:[#allocation7 + $0x640] sm:$0xff] %v609
    %1362 = vst [vmem:[#allocation7 + $0x648] sm:$0xff] %v687
    %1363 = vst [vmem:[#allocation7 + $0x650] sm:$0xff] %v765
    %1364 = vst [vmem:[#allocation7 + $0x658] sm:$0xff] %v843
    %1365 = vst [vmem:[#allocation7 + $0x660] sm:$0xff] %v921
    %1366 = vst [vmem:[#allocation7 + $0x668] sm:$0xff] %v999
    %1367 = vst [vmem:[#allocation7 + $0x670] sm:$0xff] %v1077
    %1368 = vst [vmem:[#allocation7 + $0x678] sm:$0xff] %v1155
    %1369 = vst [vmem:[#allocation7 + $0x680] sm:$0xff] %v612
    %1370 = vst [vmem:[#allocation7 + $0x688] sm:$0xff] %v690
    %1371 = vst [vmem:[#allocation7 + $0x690] sm:$0xff] %v768
    %1372 = vst [vmem:[#allocation7 + $0x698] sm:$0xff] %v846
    %1373 = vst [vmem:[#allocation7 + $0x6a0] sm:$0xff] %v924
    %1374 = vst [vmem:[#allocation7 + $0x6a8] sm:$0xff] %v1002
    %1375 = vst [vmem:[#allocation7 + $0x6b0] sm:$0xff] %v1080
    %1376 = vst [vmem:[#allocation7 + $0x6b8] sm:$0xff] %v1158
    // Predicated region
    $region18: #{tpu_custom_call.1} parent=1 // pred_check
      _
    $region19: #{tpu_custom_call.1} parent=1 // pred_check_branch
      %1378 = sbr.rel (0) target = $region21
    $region20: #{tpu_custom_call.1} parent=1 // pred_region
      %1380 = vsyncadd [#allocation4], 0
      %s1381 = sshll.u32 [#allocation7], 4
      %s1382 = int_to_ptr.vmem [resolvable:$true] %s1381
      %s1383 = sshll.u32 %s2, 4
      %s1384 = int_to_ptr.hbm [resolvable:$true] %s1383
      %1389 = dma.vmem_to_hbm [thread:$0]  %s1382, 27648, %s1384, [#allocation4], 1024, 1024, 64
    $region21: #{tpu_custom_call.1} parent=1 // pred_fallthru
      _
    // Predicated region
    $region22: #{tpu_custom_call.1} parent=1 // pred_check
      _
    $region23: #{tpu_custom_call.1} parent=1 // pred_check_branch
      %1391 = sbr.rel (0) target = $region25
    $region24: #{tpu_custom_call.1} parent=1 // pred_region
      %1393 = dma.done [#allocation4], 27648
    $region25: #{tpu_custom_call.1} parent=1 // pred_fallthru
      _
    %1394 = vsyncpa [#allocation3], 1
    %1395 = vsyncpa [#allocation6], 1
    %1396 = vsyncpa [#allocation4], 1

</llo_original>
